<compile_context>
chip_gen: v7x
topology: tpu7x:2x2x1
jax: 0.10.0
libtpu: 0.0.40
codegen_flags: <defaults>
</compile_context>

<pallas_src>
import functools

import jax
import jax.numpy as jnp
from jax.experimental import pallas as pl
from jax.experimental.pallas import tpu as pltpu

BN_EPS = 1e-5
LRELU_SLOPE = 0.2


# ----------------------------------------------------------------------------
# Fused two-pass kernel.  Grid = (pass, batch, pixel_tile).
#   x_ref    : (C,  Tm)   bf16  input tile (pixels on the 128-lane axis)
#   w1_ref   : (ndf, C)   bf16  conv1 weight       b1_ref  : (ndf, 1) f32 bias
#   w2_ref   : (C2, ndf)  bf16  conv2 weight (no bias)
#   g_ref    : (C2, 1)    f32   BN gamma           beta_ref: (C2, 1)  f32 BN beta
#   w3_ref   : (1,  C2)   bf16  conv3 weight (no bias)
#   o_ref    : (1,  Tm)   f32   single-channel output tile (lane-dense)
#   scratch  : sum, sumsq (C2,1) f32 ; BN-folded w2 (C2,ndf) bf16 ; shift (C2,1) f32
# ----------------------------------------------------------------------------
def _pixel_disc_kernel(x_ref, w1_ref, b1_ref, w2_ref, g_ref, beta_ref, w3_ref,
                       o_ref, sum_ref, ssq_ref, w2s_ref, bsh_ref, *, inv_m):
    p = pl.program_id(0)    # 0 = stats pass, 1 = normalize/output pass
    b = pl.program_id(1)    # batch image
    j = pl.program_id(2)    # pixel tile within the image

    # ---- shared by both passes: conv1 (1x1 + bias) + LeakyReLU(0.2) ----
    x = x_ref[...]                                                   # (C, Tm) bf16
    y1 = jnp.dot(w1_ref[...], x, preferred_element_type=jnp.float32)
    y1 = y1 + b1_ref[...]
    y1 = jnp.maximum(y1, LRELU_SLOPE * y1)                           # LeakyReLU
    y1b = y1.astype(jnp.bfloat16)

    # ---------------- pass 0: per-channel sum / sum-of-squares ----------------
    @pl.when(p == 0)
    def _stats():
        @pl.when((b == 0) & (j == 0))
        def _init():
            sum_ref[...] = jnp.zeros_like(sum_ref)
            ssq_ref[...] = jnp.zeros_like(ssq_ref)

        y2 = jnp.dot(w2_ref[...], y1b, preferred_element_type=jnp.float32)
        sum_ref[...] += jnp.sum(y2, axis=1, keepdims=True)
        ssq_ref[...] += jnp.sum(y2 * y2, axis=1, keepdims=True)

        @pl.when((b == pl.num_programs(1) - 1) & (j == pl.num_programs(2) - 1))
        def _finalize():
            mean = sum_ref[...] * inv_m
            var = ssq_ref[...] * inv_m - mean * mean                 # biased var
            a = g_ref[...] * jax.lax.rsqrt(var + BN_EPS)             # (C2, 1)
            bsh_ref[...] = beta_ref[...] - mean * a
            w2s_ref[...] = (a * w2_ref[...].astype(jnp.float32)).astype(jnp.bfloat16)

    # -------- pass 1: BN-folded conv2, LeakyReLU, conv3, lane-dense store -----
    @pl.when(p == 1)
    def _emit():
        y2 = jnp.dot(w2s_ref[...], y1b, preferred_element_type=jnp.float32)
        y2 = y2 + bsh_ref[...]                                       # folded BN
        z = jnp.maximum(y2, LRELU_SLOPE * y2)                        # LeakyReLU
        o_ref[...] = jnp.dot(w3_ref[...], z.astype(jnp.bfloat16),
                             preferred_element_type=jnp.float32)


def _pick_tile(mb, target=8192):
    """Largest multiple of 128 that divides H*W and is <= target pixels."""
    best = 0
    t = 128
    while t <= mb and t <= target:
        if mb % t == 0:
            best = t
        t += 128
    if best == 0:
        raise ValueError(f"H*W = {mb} must be a multiple of 128")
    return best


def pixel_discriminator_forward(x_nchw, params, tile_m=None):
    """Forward of PixelDiscriminator.  x_nchw: (N, Cin, H, W) -> (N, 1, H, W)."""
    n, c, h, w = x_nchw.shape
    mb = h * w
    ndf = params["w1"].shape[0]
    c2 = 2 * ndf

    if tile_m is None:
        tile_m = _pick_tile(mb)
    assert mb % tile_m == 0 and tile_m % 128 == 0
    num_tiles = mb // tile_m

    # NCHW -> (N, C, H*W) is a free contiguous reshape (no transpose, no copy).
    # bf16 for the dominant x stream + MXU; in a real pipeline the producer
    # should already emit bf16 so this cast fuses away.
    x_ncm = x_nchw.reshape(n, c, mb).astype(jnp.bfloat16)

    w1 = params["w1"].reshape(ndf, c).astype(jnp.bfloat16)
    b1 = params["b1"].reshape(ndf, 1).astype(jnp.float32)
    w2 = params["w2"].reshape(c2, ndf).astype(jnp.bfloat16)
    gamma = params["gamma"].reshape(c2, 1).astype(jnp.float32)
    beta = params["beta"].reshape(c2, 1).astype(jnp.float32)
    w3 = params["w3"].reshape(1, c2).astype(jnp.bfloat16)

    m_total = n * mb
    kernel = functools.partial(_pixel_disc_kernel, inv_m=1.0 / float(m_total))

    # Advisory cost estimate: conv1/conv2 are computed twice (recompute scheme),
    # conv3 once; input is read twice (once per pass).
    flops = 2 * m_total * (2 * (c * ndf + ndf * c2) + c2)
    bytes_accessed = (2 * x_ncm.size * 2
                      + m_total * 4
                      + (w1.size + w2.size + w3.size) * 2
                      + (b1.size + gamma.size + beta.size) * 4)
    cost = pl.CostEstimate(flops=int(flops), transcendentals=int(c2),
                           bytes_accessed=int(bytes_accessed))

    const = lambda p, b, j: (0, 0)   # weights stay resident in VMEM (one DMA)

    out = pl.pallas_call(
        kernel,
        out_shape=jax.ShapeDtypeStruct((n, 1, mb), jnp.float32),
        grid_spec=pltpu.PrefetchScalarGridSpec(
            num_scalar_prefetch=0,
            grid=(2, n, num_tiles),
            in_specs=[
                pl.BlockSpec((None, c, tile_m), lambda p, b, j: (b, 0, j)),  # x
                pl.BlockSpec((ndf, c), const),    # w1
                pl.BlockSpec((ndf, 1), const),    # b1
                pl.BlockSpec((c2, ndf), const),   # w2
                pl.BlockSpec((c2, 1), const),     # gamma
                pl.BlockSpec((c2, 1), const),     # beta
                pl.BlockSpec((1, c2), const),     # w3
            ],
            # During the stats pass the output window sits on block (0,0,0) and
            # is never written, so nothing is flushed to HBM until pass 1.
            out_specs=pl.BlockSpec((None, 1, tile_m),
                                   lambda p, b, j: (b * p, 0, j * p)),
            scratch_shapes=[
                pltpu.VMEM((c2, 1), jnp.float32),     # running sum
                pltpu.VMEM((c2, 1), jnp.float32),     # running sum of squares
                pltpu.VMEM((c2, ndf), jnp.bfloat16),  # BN-folded conv2 weight
                pltpu.VMEM((c2, 1), jnp.float32),     # BN-folded shift
            ],
        ),
        compiler_params=pltpu.CompilerParams(
            dimension_semantics=("arbitrary", "arbitrary", "arbitrary")),
        cost_estimate=cost,
    )(x_ncm, w1, b1, w2, gamma, beta, w3)

    # (N, 1, H*W) row-major == (N, 1, H, W) row-major.
    return out.reshape(n, 1, h, w)


# ----------------------------------------------------------------------------
# Deterministic parameter construction + pure-JAX f32 reference.
# ----------------------------------------------------------------------------
def init_params(key, input_nc, ndf):
    # norm_layer = BatchNorm2d  =>  use_bias = False for conv2 / conv3.
    k1, k2, k3, k4, k5, k6 = jax.random.split(key, 6)
    return dict(
        w1=0.05 * jax.random.normal(k1, (ndf, input_nc, 1, 1), jnp.float32),
        b1=0.05 * jax.random.normal(k2, (ndf,), jnp.float32),
        w2=0.05 * jax.random.normal(k3, (2 * ndf, ndf, 1, 1), jnp.float32),
        gamma=1.0 + 0.1 * jax.random.normal(k4, (2 * ndf,), jnp.float32),
        beta=0.1 * jax.random.normal(k5, (2 * ndf,), jnp.float32),
        w3=0.05 * jax.random.normal(k6, (1, 2 * ndf, 1, 1), jnp.float32),
    )


def reference_forward(x_nchw, params):
    """Pure-JAX f32 reference of the same forward (sanity check)."""
    n, c, h, w = x_nchw.shape
    ndf = params["w1"].shape[0]
    hi = jax.lax.Precision.HIGHEST
    xm = jnp.transpose(x_nchw, (1, 0, 2, 3)).reshape(c, -1)
    y = jnp.dot(params["w1"].reshape(ndf, c), xm, precision=hi)
    y = y + params["b1"][:, None]
    y = jnp.where(y > 0, y, LRELU_SLOPE * y)
    y = jnp.dot(params["w2"].reshape(2 * ndf, ndf), y, precision=hi)
    mean = jnp.mean(y, axis=1, keepdims=True)
    var = jnp.mean((y - mean) ** 2, axis=1, keepdims=True)
    y = (y - mean) * jax.lax.rsqrt(var + BN_EPS)
    y = y * params["gamma"][:, None] + params["beta"][:, None]
    y = jnp.where(y > 0, y, LRELU_SLOPE * y)
    y = jnp.dot(params["w3"].reshape(1, 2 * ndf), y, precision=hi)
    # (1, N*H*W) with pixels in (n, h, w) order -> (N, 1, H, W)
    return y.reshape(n, 1, h, w)


if __name__ == "__main__":
    input_nc, ndf = 4, 8
    batch, spatial = 2, 16      # H*W = 256 -> two 128-pixel tiles per image

    root = jax.random.PRNGKey(0)
    pkey, xkey = jax.random.split(root)
    params = init_params(pkey, input_nc, ndf)
    x = jax.random.normal(xkey, (batch, input_nc, spatial, spatial), jnp.float32)

    # tile_m=128 forces a multi-tile grid (2 passes x 2 images x 2 tiles) so the
    # accumulation / two-pass logic is exercised even at this toy size.
    out = pixel_discriminator_forward(x, params, tile_m=128)
    out = jax.block_until_ready(out)

    assert out.shape == (batch, 1, spatial, spatial), out.shape
    assert out.dtype == jnp.float32
    assert bool(jnp.all(jnp.isfinite(out)))

    ref = reference_forward(x, params)
    max_err = float(jnp.max(jnp.abs(out - ref)))
    assert max_err < 5e-2, f"max abs error vs f32 reference: {max_err}"

    print("KERNEL_OK")
</pallas_src>

<mosaic_0001>
module attributes {stable_mosaic.version = 11 : i64} {
  func.func @_pixel_disc_kernel(%arg0: i32, %arg1: i32, %arg2: i32, %arg3: memref<1x4x128xbf16, #tpu.memory_space<vmem>>, %arg4: memref<8x4xbf16, #tpu.memory_space<vmem>>, %arg5: memref<8x1xf32, #tpu.memory_space<vmem>>, %arg6: memref<16x8xbf16, #tpu.memory_space<vmem>>, %arg7: memref<16x1xf32, #tpu.memory_space<vmem>>, %arg8: memref<16x1xf32, #tpu.memory_space<vmem>>, %arg9: memref<1x16xbf16, #tpu.memory_space<vmem>>, %arg10: memref<1x1x128xf32, #tpu.memory_space<vmem>>, %arg11: memref<16x1xf32, #tpu.memory_space<vmem>>, %arg12: memref<16x1xf32, #tpu.memory_space<vmem>>, %arg13: memref<16x8xbf16, #tpu.memory_space<vmem>>, %arg14: memref<16x1xf32, #tpu.memory_space<vmem>>) attributes {dimension_semantics = [#tpu.dimension_semantics<arbitrary>, #tpu.dimension_semantics<arbitrary>, #tpu.dimension_semantics<arbitrary>], iteration_bounds = array<i64: 2, 2, 2>, scalar_prefetch = 0 : i64, scratch_operands = 4 : i64, tpu.core_type = #tpu.core_type<tc>, window_params = [{transform_indices = @transform_0, window_bounds = array<i64: 1, 4, 128>}, {pipeline_mode = #tpu.pipeline_mode<synchronous>, transform_indices = @transform_1, window_bounds = array<i64: 8, 4>}, {pipeline_mode = #tpu.pipeline_mode<synchronous>, transform_indices = @transform_2, window_bounds = array<i64: 8, 1>}, {pipeline_mode = #tpu.pipeline_mode<synchronous>, transform_indices = @transform_3, window_bounds = array<i64: 16, 8>}, {pipeline_mode = #tpu.pipeline_mode<synchronous>, transform_indices = @transform_4, window_bounds = array<i64: 16, 1>}, {pipeline_mode = #tpu.pipeline_mode<synchronous>, transform_indices = @transform_5, window_bounds = array<i64: 16, 1>}, {pipeline_mode = #tpu.pipeline_mode<synchronous>, transform_indices = @transform_6, window_bounds = array<i64: 1, 16>}, {transform_indices = @transform_7, window_bounds = array<i64: 1, 1, 128>}]} {
    %c0 = arith.constant 0 : index
    %c0_0 = arith.constant 0 : index
    %c0_1 = arith.constant 0 : index
    %0 = vector.load %arg3[%c0, %c0_0, %c0_1] : memref<1x4x128xbf16, #tpu.memory_space<vmem>>, vector<1x4x128xbf16>
    %1 = vector.shape_cast %0 : vector<1x4x128xbf16> to vector<4x128xbf16>
    %c0_2 = arith.constant 0 : index
    %c0_3 = arith.constant 0 : index
    %2 = vector.load %arg4[%c0_2, %c0_3] : memref<8x4xbf16, #tpu.memory_space<vmem>>, vector<8x4xbf16>
    %cst = arith.constant dense<0.000000e+00> : vector<8x128xf32>
    %3 = tpu.matmul %2, %1, %cst {dimension_numbers = #tpu.dot_dimension_numbers<[1], [0], [0], [1], [0, 0, 1, 1], [], []>} : vector<8x4xbf16>, vector<4x128xbf16>, vector<8x128xf32> -> vector<8x128xf32>
    %c0_4 = arith.constant 0 : index
    %c0_5 = arith.constant 0 : index
    %4 = vector.load %arg5[%c0_4, %c0_5] : memref<8x1xf32, #tpu.memory_space<vmem>>, vector<8x1xf32>
    %5 = vector.broadcast %4 : vector<8x1xf32> to vector<8x128xf32>
    %6 = arith.addf %3, %5 : vector<8x128xf32>
    %cst_6 = arith.constant 2.000000e-01 : f32
    %7 = vector.broadcast %cst_6 : f32 to vector<8x128xf32>
    %8 = arith.mulf %7, %6 : vector<8x128xf32>
    %9 = arith.maximumf %6, %8 : vector<8x128xf32>
    %10 = arith.truncf %9 : vector<8x128xf32> to vector<8x128xbf16>
    %c0_i32 = arith.constant 0 : i32
    %11 = arith.cmpi eq, %arg0, %c0_i32 : i32
    %12 = arith.extui %11 : i1 to i32
    %c0_i32_7 = arith.constant 0 : i32
    %13 = arith.cmpi ne, %12, %c0_i32_7 : i32
    scf.if %13 {
      %c0_i32_9 = arith.constant 0 : i32
      %17 = arith.cmpi eq, %arg1, %c0_i32_9 : i32
      %c0_i32_10 = arith.constant 0 : i32
      %18 = arith.cmpi eq, %arg2, %c0_i32_10 : i32
      %19 = arith.andi %17, %18 : i1
      %20 = arith.extui %19 : i1 to i32
      %c0_i32_11 = arith.constant 0 : i32
      %21 = arith.cmpi ne, %20, %c0_i32_11 : i32
      scf.if %21 {
        %cst_28 = arith.constant 0.000000e+00 : f32
        %40 = vector.broadcast %cst_28 : f32 to vector<16x1xf32>
        %c0_29 = arith.constant 0 : index
        %c0_30 = arith.constant 0 : index
        %41 = vector.load %arg11[%c0_29, %c0_30] : memref<16x1xf32, #tpu.memory_space<vmem>>, vector<16x1xf32>
        tpu.vector_store %arg11[%c0_29, %c0_30], %40 {strides = array<i32>} : memref<16x1xf32, #tpu.memory_space<vmem>>, vector<16x1xf32>,
        %cst_31 = arith.constant 0.000000e+00 : f32
        %42 = vector.broadcast %cst_31 : f32 to vector<16x1xf32>
        %c0_32 = arith.constant 0 : index
        %c0_33 = arith.constant 0 : index
        %43 = vector.load %arg12[%c0_32, %c0_33] : memref<16x1xf32, #tpu.memory_space<vmem>>, vector<16x1xf32>
        tpu.vector_store %arg12[%c0_32, %c0_33], %42 {strides = array<i32>} : memref<16x1xf32, #tpu.memory_space<vmem>>, vector<16x1xf32>,
      } else {
      }
      %c0_12 = arith.constant 0 : index
      %c0_13 = arith.constant 0 : index
      %22 = vector.load %arg6[%c0_12, %c0_13] : memref<16x8xbf16, #tpu.memory_space<vmem>>, vector<16x8xbf16>
      %cst_14 = arith.constant dense<0.000000e+00> : vector<16x128xf32>
      %23 = tpu.matmul %22, %10, %cst_14 {dimension_numbers = #tpu.dot_dimension_numbers<[1], [0], [0], [1], [0, 0, 1, 1], [], []>} : vector<16x8xbf16>, vector<8x128xbf16>, vector<16x128xf32> -> vector<16x128xf32>
      %c0_15 = arith.constant 0 : index
      %c0_16 = arith.constant 0 : index
      %24 = vector.load %arg11[%c0_15, %c0_16] : memref<16x1xf32, #tpu.memory_space<vmem>>, vector<16x1xf32>
      %cst_17 = arith.constant dense<0.000000e+00> : vector<16xf32>
      %25 = vector.multi_reduction <add>, %23, %cst_17 [1] : vector<16x128xf32> to vector<16xf32>
      %26 = vector.shape_cast %25 : vector<16xf32> to vector<16x1xf32>
      %27 = arith.addf %24, %26 : vector<16x1xf32>
      %c0_18 = arith.constant 0 : index
      %c0_19 = arith.constant 0 : index
      %28 = vector.load %arg11[%c0_18, %c0_19] : memref<16x1xf32, #tpu.memory_space<vmem>>, vector<16x1xf32>
      tpu.vector_store %arg11[%c0_18, %c0_19], %27 {strides = array<i32>} : memref<16x1xf32, #tpu.memory_space<vmem>>, vector<16x1xf32>,
      %c0_20 = arith.constant 0 : index
      %c0_21 = arith.constant 0 : index
      %29 = vector.load %arg12[%c0_20, %c0_21] : memref<16x1xf32, #tpu.memory_space<vmem>>, vector<16x1xf32>
      %30 = arith.mulf %23, %23 : vector<16x128xf32>
      %cst_22 = arith.constant dense<0.000000e+00> : vector<16xf32>
      %31 = vector.multi_reduction <add>, %30, %cst_22 [1] : vector<16x128xf32> to vector<16xf32>
      %32 = vector.shape_cast %31 : vector<16xf32> to vector<16x1xf32>
      %33 = arith.addf %29, %32 : vector<16x1xf32>
      %c0_23 = arith.constant 0 : index
      %c0_24 = arith.constant 0 : index
      %34 = vector.load %arg12[%c0_23, %c0_24] : memref<16x1xf32, #tpu.memory_space<vmem>>, vector<16x1xf32>
      tpu.vector_store %arg12[%c0_23, %c0_24], %33 {strides = array<i32>} : memref<16x1xf32, #tpu.memory_space<vmem>>, vector<16x1xf32>,
      %c1_i32_25 = arith.constant 1 : i32
      %35 = arith.cmpi eq, %arg1, %c1_i32_25 : i32
      %c1_i32_26 = arith.constant 1 : i32
      %36 = arith.cmpi eq, %arg2, %c1_i32_26 : i32
      %37 = arith.andi %35, %36 : i1
      %38 = arith.extui %37 : i1 to i32
      %c0_i32_27 = arith.constant 0 : i32
      %39 = arith.cmpi ne, %38, %c0_i32_27 : i32
      scf.if %39 {
        %c0_28 = arith.constant 0 : index
        %c0_29 = arith.constant 0 : index
        %40 = vector.load %arg11[%c0_28, %c0_29] : memref<16x1xf32, #tpu.memory_space<vmem>>, vector<16x1xf32>
        %cst_30 = arith.constant 0.001953125 : f32
        %41 = vector.broadcast %cst_30 : f32 to vector<16x1xf32>
        %42 = arith.mulf %40, %41 : vector<16x1xf32>
        %c0_31 = arith.constant 0 : index
        %c0_32 = arith.constant 0 : index
        %43 = vector.load %arg12[%c0_31, %c0_32] : memref<16x1xf32, #tpu.memory_space<vmem>>, vector<16x1xf32>
        %cst_33 = arith.constant 0.001953125 : f32
        %44 = vector.broadcast %cst_33 : f32 to vector<16x1xf32>
        %45 = arith.mulf %43, %44 : vector<16x1xf32>
        %46 = arith.mulf %42, %42 : vector<16x1xf32>
        %47 = arith.subf %45, %46 : vector<16x1xf32>
        %c0_34 = arith.constant 0 : index
        %c0_35 = arith.constant 0 : index
        %48 = vector.load %arg7[%c0_34, %c0_35] : memref<16x1xf32, #tpu.memory_space<vmem>>, vector<16x1xf32>
        %cst_36 = arith.constant 9.99999974E-6 : f32
        %49 = vector.broadcast %cst_36 : f32 to vector<16x1xf32>
        %50 = arith.addf %47, %49 : vector<16x1xf32>
        %51 = math.rsqrt %50 : vector<16x1xf32>
        %52 = arith.mulf %48, %51 : vector<16x1xf32>
        %c0_37 = arith.constant 0 : index
        %c0_38 = arith.constant 0 : index
        %53 = vector.load %arg8[%c0_37, %c0_38] : memref<16x1xf32, #tpu.memory_space<vmem>>, vector<16x1xf32>
        %54 = arith.mulf %42, %52 : vector<16x1xf32>
        %55 = arith.subf %53, %54 : vector<16x1xf32>
        %c0_39 = arith.constant 0 : index
        %c0_40 = arith.constant 0 : index
        %56 = vector.load %arg14[%c0_39, %c0_40] : memref<16x1xf32, #tpu.memory_space<vmem>>, vector<16x1xf32>
        tpu.vector_store %arg14[%c0_39, %c0_40], %55 {strides = array<i32>} : memref<16x1xf32, #tpu.memory_space<vmem>>, vector<16x1xf32>,
        %c0_41 = arith.constant 0 : index
        %c0_42 = arith.constant 0 : index
        %57 = vector.load %arg6[%c0_41, %c0_42] : memref<16x8xbf16, #tpu.memory_space<vmem>>, vector<16x8xbf16>
        %58 = arith.extf %57 : vector<16x8xbf16> to vector<16x8xf32>
        %59 = vector.broadcast %52 : vector<16x1xf32> to vector<16x8xf32>
        %60 = arith.mulf %59, %58 : vector<16x8xf32>
        %61 = arith.truncf %60 : vector<16x8xf32> to vector<16x8xbf16>
        %c0_43 = arith.constant 0 : index
        %c0_44 = arith.constant 0 : index
        %62 = vector.load %arg13[%c0_43, %c0_44] : memref<16x8xbf16, #tpu.memory_space<vmem>>, vector<16x8xbf16>
        tpu.vector_store %arg13[%c0_43, %c0_44], %61 {strides = array<i32>} : memref<16x8xbf16, #tpu.memory_space<vmem>>, vector<16x8xbf16>,
      } else {
      }
    } else {
    }
    %c1_i32 = arith.constant 1 : i32
    %14 = arith.cmpi eq, %arg0, %c1_i32 : i32
    %15 = arith.extui %14 : i1 to i32
    %c0_i32_8 = arith.constant 0 : i32
    %16 = arith.cmpi ne, %15, %c0_i32_8 : i32
    scf.if %16 {
      %c0_9 = arith.constant 0 : index
      %c0_10 = arith.constant 0 : index
      %17 = vector.load %arg13[%c0_9, %c0_10] : memref<16x8xbf16, #tpu.memory_space<vmem>>, vector<16x8xbf16>
      %cst_11 = arith.constant dense<0.000000e+00> : vector<16x128xf32>
      %18 = tpu.matmul %17, %10, %cst_11 {dimension_numbers = #tpu.dot_dimension_numbers<[1], [0], [0], [1], [0, 0, 1, 1], [], []>} : vector<16x8xbf16>, vector<8x128xbf16>, vector<16x128xf32> -> vector<16x128xf32>
      %c0_12 = arith.constant 0 : index
      %c0_13 = arith.constant 0 : index
      %19 = vector.load %arg14[%c0_12, %c0_13] : memref<16x1xf32, #tpu.memory_space<vmem>>, vector<16x1xf32>
      %20 = vector.broadcast %19 : vector<16x1xf32> to vector<16x128xf32>
      %21 = arith.addf %18, %20 : vector<16x128xf32>
      %cst_14 = arith.constant 2.000000e-01 : f32
      %22 = vector.broadcast %cst_14 : f32 to vector<16x128xf32>
      %23 = arith.mulf %22, %21 : vector<16x128xf32>
      %24 = arith.maximumf %21, %23 : vector<16x128xf32>
      %c0_15 = arith.constant 0 : index
      %c0_16 = arith.constant 0 : index
      %25 = vector.load %arg9[%c0_15, %c0_16] : memref<1x16xbf16, #tpu.memory_space<vmem>>, vector<1x16xbf16>
      %26 = arith.truncf %24 : vector<16x128xf32> to vector<16x128xbf16>
      %cst_17 = arith.constant dense<0.000000e+00> : vector<1x128xf32>
      %27 = tpu.matmul %25, %26, %cst_17 {dimension_numbers = #tpu.dot_dimension_numbers<[1], [0], [0], [1], [0, 0, 1, 1], [], []>} : vector<1x16xbf16>, vector<16x128xbf16>, vector<1x128xf32> -> vector<1x128xf32>
      %c0_18 = arith.constant 0 : index
      %c0_19 = arith.constant 0 : index
      %c0_20 = arith.constant 0 : index
      %28 = vector.load %arg10[%c0_18, %c0_19, %c0_20] : memref<1x1x128xf32, #tpu.memory_space<vmem>>, vector<1x1x128xf32>
      %29 = vector.shape_cast %28 : vector<1x1x128xf32> to vector<1x128xf32>
      %30 = vector.shape_cast %27 : vector<1x128xf32> to vector<1x1x128xf32>
      tpu.vector_store %arg10[%c0_18, %c0_19, %c0_20], %30 {strides = array<i32>} : memref<1x1x128xf32, #tpu.memory_space<vmem>>, vector<1x1x128xf32>,
    } else {
    }
    return
  }
  func.func @transform_0(%arg0: i32, %arg1: i32, %arg2: i32) -> (i32, i32, i32) {
    %c0_i32 = arith.constant 0 : i32
    %c0_i32_0 = arith.constant 0 : i32
    return %arg1, %c0_i32, %arg2 : i32, i32, i32
  }
  func.func @transform_1(%arg0: i32, %arg1: i32, %arg2: i32) -> (i32, i32) {
    %c0_i32 = arith.constant 0 : i32
    %c0_i32_0 = arith.constant 0 : i32
    %c0_i32_1 = arith.constant 0 : i32
    return %c0_i32, %c0_i32_0 : i32, i32
  }
  func.func @transform_2(%arg0: i32, %arg1: i32, %arg2: i32) -> (i32, i32) {
    %c0_i32 = arith.constant 0 : i32
    %c0_i32_0 = arith.constant 0 : i32
    %c0_i32_1 = arith.constant 0 : i32
    return %c0_i32, %c0_i32_0 : i32, i32
  }
  func.func @transform_3(%arg0: i32, %arg1: i32, %arg2: i32) -> (i32, i32) {
    %c0_i32 = arith.constant 0 : i32
    %c0_i32_0 = arith.constant 0 : i32
    %c0_i32_1 = arith.constant 0 : i32
    return %c0_i32, %c0_i32_0 : i32, i32
  }
  func.func @transform_4(%arg0: i32, %arg1: i32, %arg2: i32) -> (i32, i32) {
    %c0_i32 = arith.constant 0 : i32
    %c0_i32_0 = arith.constant 0 : i32
    %c0_i32_1 = arith.constant 0 : i32
    return %c0_i32, %c0_i32_0 : i32, i32
  }
  func.func @transform_5(%arg0: i32, %arg1: i32, %arg2: i32) -> (i32, i32) {
    %c0_i32 = arith.constant 0 : i32
    %c0_i32_0 = arith.constant 0 : i32
    %c0_i32_1 = arith.constant 0 : i32
    return %c0_i32, %c0_i32_0 : i32, i32
  }
  func.func @transform_6(%arg0: i32, %arg1: i32, %arg2: i32) -> (i32, i32) {
    %c0_i32 = arith.constant 0 : i32
    %c0_i32_0 = arith.constant 0 : i32
    %c0_i32_1 = arith.constant 0 : i32
    return %c0_i32, %c0_i32_0 : i32, i32
  }
  func.func @transform_7(%arg0: i32, %arg1: i32, %arg2: i32) -> (i32, i32, i32) {
    %0 = arith.muli %arg1, %arg0 : i32
    %1 = arith.muli %arg2, %arg0 : i32
    %c0_i32 = arith.constant 0 : i32
    %c0_i32_0 = arith.constant 0 : i32
    return %0, %c0_i32, %1 : i32, i32, i32
  }
}

</mosaic_0001>

<llo_original>
// kernel: tpu_custom_call.1
$region0: #{tpu_custom_call.1}
  #allocation0 [shape = 'u32[]', space=smem, size = 0x4, offset = 0x4, fixed_abs, tag = 'smem constant byte address 0x4 - core index']
  #allocation1 [shape = 'u32[144,128]{1,0:T(1,128)}', space=vmem, size = 0x12000, scoped, tag = 'internal scratch']
  #allocation2 [shape = 'f32[16,1]{1,0:T(8,128)}', space=vmem, size = 0x2000, scoped, tag = 'scratch operand']
  #allocation3 [shape = 'f32[16,1]{1,0:T(8,128)}', space=vmem, size = 0x2000, scoped, tag = 'scratch operand']
  #allocation4 [shape = 'bf16[16,8]{1,0:T(16,128)(2,1)}', space=vmem, size = 0x1000, scoped, tag = 'scratch operand']
  #allocation5 [shape = 'f32[16,1]{1,0:T(8,128)}', space=vmem, size = 0x2000, scoped, tag = 'scratch operand']
  %s0 = inlined_call_operand.vmem [shape: bf16[2,4,256], index: 0, kind: input, shape index: {}]
  %s1 = inlined_call_operand.vmem [shape: bf16[8,4], index: 1, kind: input, shape index: {}]
  %s2 = inlined_call_operand.vmem [shape: f32[8,1], index: 2, kind: input, shape index: {}]
  %s3 = inlined_call_operand.vmem [shape: bf16[16,8], index: 3, kind: input, shape index: {}]
  %s4 = inlined_call_operand.vmem [shape: f32[16,1], index: 4, kind: input, shape index: {}]
  %s5 = inlined_call_operand.vmem [shape: f32[16,1], index: 5, kind: input, shape index: {}]
  %s6 = inlined_call_operand.vmem [shape: bf16[1,16], index: 6, kind: input, shape index: {}]
  %s7 = inlined_call_operand.hbm [shape: f32[2,1,256], index: 7, kind: output, shape index: {}]
  %s8 = sld [smem:[#allocation0]]
  $region77: #{tpu_custom_call.1} parent=0
    _
  %s10 = ssub.s32 1, %s8
  %s11 = scalar_select 0, %s10, %s8
  $region1: #{tpu_custom_call.1} parent=0
    #allocation6 [shape = 'u8[1024]{0}', space=vmem, size = 0x400, scoped, tag = 'output window, operand 0']
    #allocation7 [shape = 's32[2]{0}', space=sflag, size = 0x8, scoped, tag = 'scoped memory for tpu_custom_call.1']
    %12 = vsyncpa [#allocation7], 0
    %s13 = scalar_lea.sflag [#allocation7], 1
    %14 = vsyncpa %s13, 0
    loop: start=0, step=1, limit=10
    $region2: #{tpu_custom_call.1} parent=1 // loop_pre_header
      _
    $region3: #{tpu_custom_call.1} parent=1 // loop_header
      %s16 = sphi 0, %s20
      %p17 = scmp.ge.s32.totalorder %s16, 10
      %s23 = sphi 0, %s42
      %s24 = sphi 0, %s38
      %s25 = sphi 0, %s34
      %s26 = sphi 0, %s23
      %s27 = sphi 0, %s24
      %s28 = sphi 0, %s25
      %s29 = sphi 0, %s26
      %s30 = sphi 0, %s27
      %s31 = sphi 0, %s28
      %s47 = sphi 0, %s49
      %s50 = sphi 0, %s47
      %s51 = sphi 0, %s50
      %s67 = sphi 0, %s51
      %s71 = sphi 0, %s71
      %s73 = sphi 0, %s71
      %s74 = sphi 0, %s73
      %s88 = sphi 0, %s74
      %s92 = sphi 0, %s92
      %s94 = sphi 0, %s92
      %s95 = sphi 0, %s94
      %s109 = sphi 0, %s95
      %s113 = sphi 0, %s113
      %s115 = sphi 0, %s113
      %s116 = sphi 0, %s115
      %s130 = sphi 0, %s116
      %s134 = sphi 0, %s134
      %s136 = sphi 0, %s134
      %s137 = sphi 0, %s136
      %s151 = sphi 0, %s137
      %s155 = sphi 0, %s155
      %s157 = sphi 0, %s155
      %s158 = sphi 0, %s157
      %s172 = sphi 0, %s158
      %s176 = sphi 0, %s176
      %s178 = sphi 0, %s176
      %s179 = sphi 0, %s178
      %s193 = sphi 0, %s179
      %s205 = sphi 0, %s207
      %s208 = sphi 0, %s205
      %s209 = sphi 0, %s208
      %s225 = sphi 0, %s209
    $region4: #{tpu_custom_call.1} parent=1 // loop_header_branch
      %19 = sbr.rel (%p17) target = $region8
    $region5: #{tpu_custom_call.1} parent=1 // loop_body
      %s21 = ssub.s32 %s16, 1
      %s22 = ssub.s32 %s16, 2
      %s32 = sadd.s32 1, %s25
      %p33 = scmp.ge.s32.totalorder %s32, 2
      %s34 = scalar_select %p33, 0, %s32
      %s35 = sadd.s32 1, %s24
      %s36 = scalar_select %p33, %s35, %s24
      %p37 = scmp.ge.s32.totalorder %s36, 2
      %s38 = scalar_select %p37, 0, %s36
      %s39 = sadd.s32 1, %s23
      %s40 = scalar_select %p37, %s39, %s23
      %p41 = scmp.ge.s32.totalorder %s40, 2
      %s42 = scalar_select %p41, 0, %s40
      %s43 = ssub.s32 %s24, %s38
      %s44 = ssub.s32 %s25, %s34
      %s45 = sor.u32 %s43, %s44
      %p46 = scmp.eq.s32.totalorder %s45, 0
      %s48 = sadd.s32 %s47, 1
      %s49 = scalar_select %p46, %s47, %s48
      %p52 = pneg %p46
      %p53 = scmp.eq.s32.totalorder %s16, 7
      %p54 = por %p52, %p53
      %p55 = scmp.ne.s32.totalorder %s47, %s50
      %p56 = scmp.eq.s32.totalorder %s16, 0
      %p57 = por %p55, %p56
      %p58 = scmp.ne.s32.totalorder %s47, %s50
      %p59 = scmp.eq.s32.totalorder %s21, 7
      %p60 = por %p58, %p59
      %p61 = scmp.ne.s32.totalorder %s50, %s51
      %p62 = scmp.eq.s32.totalorder %s21, 0
      %p63 = por %p61, %p62
      %p64 = scmp.ne.s32.totalorder %s50, %s51
      %p65 = scmp.eq.s32.totalorder %s22, 7
      %p66 = por %p64, %p65
      %p68 = scmp.ne.s32.totalorder %s51, %s67
      %p69 = scmp.eq.s32.totalorder %s22, 0
      %p70 = por %p68, %p69
      %s72 = sadd.s32 %s71, 1
      %p75 = scmp.eq.s32.totalorder %s16, 7
      %p76 = scmp.ne.s32.totalorder %s71, %s73
      %p77 = scmp.eq.s32.totalorder %s16, 0
      %p78 = por %p76, %p77
      %p79 = scmp.ne.s32.totalorder %s71, %s73
      %p80 = scmp.eq.s32.totalorder %s21, 7
      %p81 = por %p79, %p80
      %p82 = scmp.ne.s32.totalorder %s73, %s74
      %p83 = scmp.eq.s32.totalorder %s21, 0
      %p84 = por %p82, %p83
      %p85 = scmp.ne.s32.totalorder %s73, %s74
      %p86 = scmp.eq.s32.totalorder %s22, 7
      %p87 = por %p85, %p86
      %p89 = scmp.ne.s32.totalorder %s74, %s88
      %p90 = scmp.eq.s32.totalorder %s22, 0
      %p91 = por %p89, %p90
      %s93 = sadd.s32 %s92, 1
      %p96 = scmp.eq.s32.totalorder %s16, 7
      %p97 = scmp.ne.s32.totalorder %s92, %s94
      %p98 = scmp.eq.s32.totalorder %s16, 0
      %p99 = por %p97, %p98
      %p100 = scmp.ne.s32.totalorder %s92, %s94
      %p101 = scmp.eq.s32.totalorder %s21, 7
      %p102 = por %p100, %p101
      %p103 = scmp.ne.s32.totalorder %s94, %s95
      %p104 = scmp.eq.s32.totalorder %s21, 0
      %p105 = por %p103, %p104
      %p106 = scmp.ne.s32.totalorder %s94, %s95
      %p107 = scmp.eq.s32.totalorder %s22, 7
      %p108 = por %p106, %p107
      %p110 = scmp.ne.s32.totalorder %s95, %s109
      %p111 = scmp.eq.s32.totalorder %s22, 0
      %p112 = por %p110, %p111
      %s114 = sadd.s32 %s113, 1
      %p117 = scmp.eq.s32.totalorder %s16, 7
      %p118 = scmp.ne.s32.totalorder %s113, %s115
      %p119 = scmp.eq.s32.totalorder %s16, 0
      %p120 = por %p118, %p119
      %p121 = scmp.ne.s32.totalorder %s113, %s115
      %p122 = scmp.eq.s32.totalorder %s21, 7
      %p123 = por %p121, %p122
      %p124 = scmp.ne.s32.totalorder %s115, %s116
      %p125 = scmp.eq.s32.totalorder %s21, 0
      %p126 = por %p124, %p125
      %p127 = scmp.ne.s32.totalorder %s115, %s116
      %p128 = scmp.eq.s32.totalorder %s22, 7
      %p129 = por %p127, %p128
      %p131 = scmp.ne.s32.totalorder %s116, %s130
      %p132 = scmp.eq.s32.totalorder %s22, 0
      %p133 = por %p131, %p132
      %s135 = sadd.s32 %s134, 1
      %p138 = scmp.eq.s32.totalorder %s16, 7
      %p139 = scmp.ne.s32.totalorder %s134, %s136
      %p140 = scmp.eq.s32.totalorder %s16, 0
      %p141 = por %p139, %p140
      %p142 = scmp.ne.s32.totalorder %s134, %s136
      %p143 = scmp.eq.s32.totalorder %s21, 7
      %p144 = por %p142, %p143
      %p145 = scmp.ne.s32.totalorder %s136, %s137
      %p146 = scmp.eq.s32.totalorder %s21, 0
      %p147 = por %p145, %p146
      %p148 = scmp.ne.s32.totalorder %s136, %s137
      %p149 = scmp.eq.s32.totalorder %s22, 7
      %p150 = por %p148, %p149
      %p152 = scmp.ne.s32.totalorder %s137, %s151
      %p153 = scmp.eq.s32.totalorder %s22, 0
      %p154 = por %p152, %p153
      %s156 = sadd.s32 %s155, 1
      %p159 = scmp.eq.s32.totalorder %s16, 7
      %p160 = scmp.ne.s32.totalorder %s155, %s157
      %p161 = scmp.eq.s32.totalorder %s16, 0
      %p162 = por %p160, %p161
      %p163 = scmp.ne.s32.totalorder %s155, %s157
      %p164 = scmp.eq.s32.totalorder %s21, 7
      %p165 = por %p163, %p164
      %p166 = scmp.ne.s32.totalorder %s157, %s158
      %p167 = scmp.eq.s32.totalorder %s21, 0
      %p168 = por %p166, %p167
      %p169 = scmp.ne.s32.totalorder %s157, %s158
      %p170 = scmp.eq.s32.totalorder %s22, 7
      %p171 = por %p169, %p170
      %p173 = scmp.ne.s32.totalorder %s158, %s172
      %p174 = scmp.eq.s32.totalorder %s22, 0
      %p175 = por %p173, %p174
      %s177 = sadd.s32 %s176, 1
      %p180 = scmp.eq.s32.totalorder %s16, 7
      %p181 = scmp.ne.s32.totalorder %s176, %s178
      %p182 = scmp.eq.s32.totalorder %s16, 0
      %p183 = por %p181, %p182
      %p184 = scmp.ne.s32.totalorder %s176, %s178
      %p185 = scmp.eq.s32.totalorder %s21, 7
      %p186 = por %p184, %p185
      %p187 = scmp.ne.s32.totalorder %s178, %s179
      %p188 = scmp.eq.s32.totalorder %s21, 0
      %p189 = por %p187, %p188
      %p190 = scmp.ne.s32.totalorder %s178, %s179
      %p191 = scmp.eq.s32.totalorder %s22, 7
      %p192 = por %p190, %p191
      %p194 = scmp.ne.s32.totalorder %s179, %s193
      %p195 = scmp.eq.s32.totalorder %s22, 0
      %p196 = por %p194, %p195
      %s197 = smul.u32 %s24, %s23
      %s198 = smul.u32 %s25, %s23
      %s199 = smul.u32 %s38, %s42
      %s200 = smul.u32 %s34, %s42
      %s201 = ssub.s32 %s197, %s199
      %s202 = ssub.s32 %s198, %s200
      %s203 = sor.u32 %s201, %s202
      %p204 = scmp.eq.s32.totalorder %s203, 0
      %s206 = sadd.s32 %s205, 1
      %s207 = scalar_select %p204, %s205, %s206
      %p210 = pneg %p204
      %p211 = scmp.eq.s32.totalorder %s16, 7
      %p212 = por %p210, %p211
      %p213 = scmp.ne.s32.totalorder %s205, %s208
      %p214 = scmp.eq.s32.totalorder %s16, 0
      %p215 = por %p213, %p214
      %p216 = scmp.ne.s32.totalorder %s205, %s208
      %p217 = scmp.eq.s32.totalorder %s21, 7
      %p218 = por %p216, %p217
      %p219 = scmp.ne.s32.totalorder %s208, %s209
      %p220 = scmp.eq.s32.totalorder %s21, 0
      %p221 = por %p219, %p220
      %p222 = scmp.ne.s32.totalorder %s208, %s209
      %p223 = scmp.eq.s32.totalorder %s22, 7
      %p224 = por %p222, %p223
      %p226 = scmp.ne.s32.totalorder %s209, %s225
      %p227 = scmp.eq.s32.totalorder %s22, 0
      %p228 = por %p226, %p227
      %p229 = scmp.le.s32.totalorder 1, %s16
      %p230 = scmp.lt.s32.totalorder %s16, 9
      %p231 = pnand %p229, %p230
      %p232 = pneg %p231
      // Predicated region
      $region9: #{tpu_custom_call.1} parent=5 // pred_check
        _
      $region10: #{tpu_custom_call.1} parent=5 // pred_check_branch
        %234 = sbr.rel (%p231) target = $region12
      $region11: #{tpu_custom_call.1} parent=5 // pred_region
        %s235 = ssub.s32 %s16, 1
        // Predicated region
        $region13: #{tpu_custom_call.1} parent=11 // pred_check
          %p236 = pneg %p84
        $region14: #{tpu_custom_call.1} parent=11 // pred_check_branch
          %238 = sbr.rel (%p236) target = $region16
        $region15: #{tpu_custom_call.1} parent=11 // pred_region
          _
        $region16: #{tpu_custom_call.1} parent=11 // pred_fallthru
          _
        // Predicated region
        $region17: #{tpu_custom_call.1} parent=11 // pred_check
          %p239 = pneg %p105
        $region18: #{tpu_custom_call.1} parent=11 // pred_check_branch
          %241 = sbr.rel (%p239) target = $region20
        $region19: #{tpu_custom_call.1} parent=11 // pred_region
          _
        $region20: #{tpu_custom_call.1} parent=11 // pred_fallthru
          _
        // Predicated region
        $region21: #{tpu_custom_call.1} parent=11 // pred_check
          %p242 = pneg %p126
        $region22: #{tpu_custom_call.1} parent=11 // pred_check_branch
          %244 = sbr.rel (%p242) target = $region24
        $region23: #{tpu_custom_call.1} parent=11 // pred_region
          _
        $region24: #{tpu_custom_call.1} parent=11 // pred_fallthru
          _
        // Predicated region
        $region25: #{tpu_custom_call.1} parent=11 // pred_check
          %p245 = pneg %p147
        $region26: #{tpu_custom_call.1} parent=11 // pred_check_branch
          %247 = sbr.rel (%p245) target = $region28
        $region27: #{tpu_custom_call.1} parent=11 // pred_region
          _
        $region28: #{tpu_custom_call.1} parent=11 // pred_fallthru
          _
        // Predicated region
        $region29: #{tpu_custom_call.1} parent=11 // pred_check
          %p248 = pneg %p168
        $region30: #{tpu_custom_call.1} parent=11 // pred_check_branch
          %250 = sbr.rel (%p248) target = $region32
        $region31: #{tpu_custom_call.1} parent=11 // pred_region
          _
        $region32: #{tpu_custom_call.1} parent=11 // pred_fallthru
          _
        // Predicated region
        $region33: #{tpu_custom_call.1} parent=11 // pred_check
          %p251 = pneg %p189
        $region34: #{tpu_custom_call.1} parent=11 // pred_check_branch
          %253 = sbr.rel (%p251) target = $region36
        $region35: #{tpu_custom_call.1} parent=11 // pred_region
          _
        $region36: #{tpu_custom_call.1} parent=11 // pred_fallthru
          _
      $region12: #{tpu_custom_call.1} parent=5 // pred_fallthru
        _
      %p254 = scmp.lt.s32.totalorder %s16, 8
      // Predicated region
      $region37: #{tpu_custom_call.1} parent=5 // pred_check
        %p255 = pneg %p254
      $region38: #{tpu_custom_call.1} parent=5 // pred_check_branch
        %257 = sbr.rel (%p255) target = $region40
      $region39: #{tpu_custom_call.1} parent=5 // pred_region
        // Predicated region
        $region41: #{tpu_custom_call.1} parent=39 // pred_check
          %p258 = pneg %p57
        $region42: #{tpu_custom_call.1} parent=39 // pred_check_branch
          %260 = sbr.rel (%p258) target = $region44
        $region43: #{tpu_custom_call.1} parent=39 // pred_region
          %p261 = scmp.lt.s32.totalorder %s24, 1
          %s262 = scalar_select %p261, %s24, 1
          %p263 = scmp.lt.s32.totalorder %s25, 1
          %s264 = scalar_select %p263, %s25, 1
          %s265 = smul.addr %s262, 2
          %s266 = sadd.s32 %s264, %s265
          %s267 = smul.addr %s266, 2
          %s268 = scalar_lea.vmem %s0, %s267
        $region44: #{tpu_custom_call.1} parent=39 // pred_fallthru
          _
      $region40: #{tpu_custom_call.1} parent=5 // pred_fallthru
        _
      %p269 = scmp.le.s32.totalorder 1, %s16
      %p270 = scmp.lt.s32.totalorder %s16, 9
      %p271 = pnand %p269, %p270
      %p272 = pneg %p271
      // Predicated region
      $region45: #{tpu_custom_call.1} parent=5 // pred_check
        _
      $region46: #{tpu_custom_call.1} parent=5 // pred_check_branch
        %274 = sbr.rel (%p271) target = $region48
      $region47: #{tpu_custom_call.1} parent=5 // pred_region
        %s275 = ssub.s32 %s16, 1
        %p276 = scmp.lt.s32.totalorder %s27, 1
        %s277 = scalar_select %p276, %s27, 1
        %p278 = scmp.lt.s32.totalorder %s28, 1
        %s279 = scalar_select %p278, %s28, 1
        %s280 = smul.addr %s277, 2
        %s281 = sadd.s32 %s279, %s280
        %s282 = smul.addr %s281, 2
        %s283 = scalar_lea.vmem %s0, %s282
        %p284 = pneg %p63
        %p285 = pneg %p60
        %p286 = pneg %p84
        %p287 = pneg %p81
        %p288 = pneg %p105
        %p289 = pneg %p102
        %p290 = pneg %p126
        %p291 = pneg %p123
        %p292 = pneg %p147
        %p293 = pneg %p144
        %p294 = pneg %p168
        %p295 = pneg %p165
        %p296 = pneg %p189
        %p297 = pneg %p186
        %p298 = pneg %p221
        %p299 = pneg %p218
        %s300 = sand.u32 %s208, 1
        %s301 = scalar_lea.sflag [#allocation7], %s300
        %s302 = sand.u32 %s208, 1
        %s303 = scalar_lea.vmem [#allocation6], %s302
        %p304 = scmp.lt.s32.totalorder %s27, 1
        %s305 = scalar_select %p304, %s27, 1
        %p306 = scmp.lt.s32.totalorder %s28, 1
        %s307 = scalar_select %p306, %s28, 1
        %s308 = smul.addr %s305, 2
        %s309 = sadd.s32 %s307, %s308
        %s310 = smul.addr %s309, 2
        %s311 = scalar_lea.vmem %s0, %s310
        %s312 = smul.u32 %s27, %s26
        %s313 = smul.u32 %s28, %s26
        %v315 = vld [vmem:[%s311] sm:$0x3]
        %v316 = vld [vmem:[%s1] sm:$0xf]
        %v317 = vld [vmem:[%s2] sm:$0xff]
        %319 = vset.pattern.permute.xlu0 0
        %320 = vperm.xlu0 %319, %v317
        %v321 = vpop.permute.xlu0 %320
        %vm323 = vcmask 31744
        %v325 = vsel %vm323, %v316, 0
        %vm327 = vcmask 1041408
        %v329 = vsel %vm327, %v315, 0
        %331 = vmatprep.subr.bf16.mxu0 0
        %332 = vmatpush1.bf16.msra.mxu0 %v329
        %333 = vmatprep.subr.bf16.mxu0 0
        %334 = vmatpush1.bf16.msra.mxu0 0
        %335 = vmatprep.subr.bf16.mxu0 0
        %336 = vmatpush1.bf16.msra.mxu0 0
        %337 = vmatprep.subr.bf16.mxu0 0
        %338 = vmatpush1.bf16.msra.mxu0 0
        %339 = vmatprep.subr.bf16.mxu0 0
        %340 = vmatpush1.bf16.msra.mxu0 0
        %341 = vmatprep.subr.bf16.mxu0 0
        %342 = vmatpush1.bf16.msra.mxu0 0
        %343 = vmatprep.subr.bf16.mxu0 0
        %344 = vmatpush1.bf16.msra.mxu0 0
        %345 = vmatprep.subr.bf16.mxu0 0
        %346 = vmatpush1.bf16.msra.mxu0 0
        %347 = vmatprep.subr.bf16.mxu0 0
        %348 = vmatpush1.bf16.msra.mxu0 0
        %349 = vmatprep.subr.bf16.mxu0 0
        %350 = vmatpush1.bf16.msra.mxu0 0
        %351 = vmatprep.subr.bf16.mxu0 0
        %352 = vmatpush1.bf16.msra.mxu0 0
        %353 = vmatprep.subr.bf16.mxu0 0
        %354 = vmatpush1.bf16.msra.mxu0 0
        %355 = vmatprep.subr.bf16.mxu0 0
        %356 = vmatpush1.bf16.msra.mxu0 0
        %357 = vmatprep.subr.bf16.mxu0 0
        %358 = vmatpush1.bf16.msra.mxu0 0
        %359 = vmatprep.subr.bf16.mxu0 0
        %360 = vmatpush1.bf16.msra.mxu0 0
        %361 = vmatprep.subr.bf16.mxu0 0
        %362 = vmatpush1.bf16.msra.mxu0 0
        %363 = vmatprep.mubr.bf16.mxu0 0
        %364 = vmatmul.mubr.bf16.gmra.mrb[0].mxu0 %v325
        %v365 = vpop.f32.mrb[0].mxu0
        %v366 = vadd.f32 %v321, %v365
        %v367 = vpop.f32.mrb[0].mxu0
        %v368 = vpop.f32.mrb[0].mxu0
        %v369 = vpop.f32.mrb[0].mxu0
        %370 = vdwg.mxu0
        %v371 = vmul.f32 %v366, 0.2
        %v372 = vmax.f32 %v366, %v371
        %v373 = vpack.c.bf16 %v372, %v372
        %p374 = scmp.eq.s32.totalorder %s26, 0
        // Predicated region
        $region49: #{tpu_custom_call.1} parent=47 // pred_check
          %p375 = pneg %p374
        $region50: #{tpu_custom_call.1} parent=47 // pred_check_branch
          %377 = sbr.rel (%p375) target = $region52
        $region51: #{tpu_custom_call.1} parent=47 // pred_region
          %p378 = scmp.eq.s32.totalorder %s27, 0
          %p379 = scmp.eq.s32.totalorder %s28, 0
          %p380 = pnand %p378, %p379
          %p381 = pneg %p380
          // Predicated region
          $region53: #{tpu_custom_call.1} parent=51 // pred_check
            _
          $region54: #{tpu_custom_call.1} parent=51 // pred_check_branch
            %383 = sbr.rel (%p380) target = $region56
          $region55: #{tpu_custom_call.1} parent=51 // pred_region
            %vm384 = vcmask 7168
            %385 = vst.msk [vmem:[#allocation2] sm:$0xff] %vm384, 0.0
            %386 = vst.msk [vmem:[#allocation2 + $0x8] sm:$0xff] %vm384, 0.0
            %387 = vst.msk [vmem:[#allocation3] sm:$0xff] %vm384, 0.0
            %388 = vst.msk [vmem:[#allocation3 + $0x8] sm:$0xff] %vm384, 0.0
          $region56: #{tpu_custom_call.1} parent=51 // pred_fallthru
            _
          %v389 = vld [vmem:[%s3] sm:$0xf]
          %v390 = vld [vmem:[%s3 + $0x4] sm:$0xf]
          %v393 = vunpack.c.l.b16 %v389
          %v394 = vunpack.c.l.b16 %v390
          %v395 = vpack.c.b16 %v394, %v393
          %vm396 = vcmask 64512
          %v398 = vsel %vm396, %v395, 0
          %vm400 = vcmask 1043456
          %v402 = vsel %vm400, %v373, 0
          %404 = vmatprep.subr.bf16.mxu0 0
          %405 = vmatpush1.bf16.msra.mxu0 %v402
          %406 = vmatprep.subr.bf16.mxu0 0
          %407 = vmatpush1.bf16.msra.mxu0 0
          %408 = vmatprep.subr.bf16.mxu0 0
          %409 = vmatpush1.bf16.msra.mxu0 0
          %410 = vmatprep.subr.bf16.mxu0 0
          %411 = vmatpush1.bf16.msra.mxu0 0
          %412 = vmatprep.subr.bf16.mxu0 0
          %413 = vmatpush1.bf16.msra.mxu0 0
          %414 = vmatprep.subr.bf16.mxu0 0
          %415 = vmatpush1.bf16.msra.mxu0 0
          %416 = vmatprep.subr.bf16.mxu0 0
          %417 = vmatpush1.bf16.msra.mxu0 0
          %418 = vmatprep.subr.bf16.mxu0 0
          %419 = vmatpush1.bf16.msra.mxu0 0
          %420 = vmatprep.subr.bf16.mxu0 0
          %421 = vmatpush1.bf16.msra.mxu0 0
          %422 = vmatprep.subr.bf16.mxu0 0
          %423 = vmatpush1.bf16.msra.mxu0 0
          %424 = vmatprep.subr.bf16.mxu0 0
          %425 = vmatpush1.bf16.msra.mxu0 0
          %426 = vmatprep.subr.bf16.mxu0 0
          %427 = vmatpush1.bf16.msra.mxu0 0
          %428 = vmatprep.subr.bf16.mxu0 0
          %429 = vmatpush1.bf16.msra.mxu0 0
          %430 = vmatprep.subr.bf16.mxu0 0
          %431 = vmatpush1.bf16.msra.mxu0 0
          %432 = vmatprep.subr.bf16.mxu0 0
          %433 = vmatpush1.bf16.msra.mxu0 0
          %434 = vmatprep.subr.bf16.mxu0 0
          %435 = vmatpush1.bf16.msra.mxu0 0
          %436 = vmatprep.mubr.bf16.mxu0 0
          %437 = vmatmul.mubr.bf16.gmra.mrb[0].mxu0 %v398
          %v438 = vpop.f32.mrb[0].mxu0
          %v439 = vadd.f32 0.0, %v438
          %v440 = vpop.f32.mrb[0].mxu0
          %v441 = vpop.f32.mrb[0].mxu0
          %v442 = vadd.f32 0.0, %v441
          %v443 = vpop.f32.mrb[0].mxu0
          %444 = vdwg.mxu0
          %v445 = vld [vmem:[#allocation2] sm:$0xff]
          %v446 = vld [vmem:[#allocation2 + $0x8] sm:$0xff]
          %447 = vadd.xlane.f32.xlu0 %v439
          %v448 = vpop.xlane.xlu0 %447
          %449 = vadd.xlane.f32.xlu0 %v442
          %v450 = vpop.xlane.xlu0 %449
          %v451 = vadd.f32 %v445, %v448
          %v452 = vadd.f32 %v446, %v450
          %vm453 = vcmask 7168
          %454 = vst.msk [vmem:[#allocation2] sm:$0xff] %vm453, %v451
          %455 = vst.msk [vmem:[#allocation2 + $0x8] sm:$0xff] %vm453, %v452
          %v456 = vld [vmem:[#allocation3] sm:$0xff]
          %v457 = vld [vmem:[#allocation3 + $0x8] sm:$0xff]
          %v458 = vmul.f32 %v439, %v439
          %v459 = vmul.f32 %v442, %v442
          %460 = vadd.xlane.f32.xlu0 %v458
          %v461 = vpop.xlane.xlu0 %460
          %462 = vadd.xlane.f32.xlu0 %v459
          %v463 = vpop.xlane.xlu0 %462
          %v464 = vadd.f32 %v456, %v461
          %v465 = vadd.f32 %v457, %v463
          %466 = vst.msk [vmem:[#allocation3] sm:$0xff] %vm453, %v464
          %467 = vst.msk [vmem:[#allocation3 + $0x8] sm:$0xff] %vm453, %v465
          %p468 = scmp.eq.s32.totalorder %s27, 1
          %p469 = scmp.eq.s32.totalorder %s28, 1
          %p470 = pnand %p468, %p469
          %p471 = pneg %p470
          // Predicated region
          $region57: #{tpu_custom_call.1} parent=51 // pred_check
            _
          $region58: #{tpu_custom_call.1} parent=51 // pred_check_branch
            %473 = sbr.rel (%p470) target = $region60
          $region59: #{tpu_custom_call.1} parent=51 // pred_region
            %v474 = vld [vmem:[#allocation2] sm:$0xff]
            %v475 = vld [vmem:[#allocation2 + $0x8] sm:$0xff]
            %v476 = vmul.f32 %v474, 0.001953125
            %v477 = vmul.f32 %v475, 0.001953125
            %v478 = vld [vmem:[#allocation3] sm:$0xff]
            %v479 = vld [vmem:[#allocation3 + $0x8] sm:$0xff]
            %v480 = vmul.f32 %v478, 0.001953125
            %v481 = vmul.f32 %v479, 0.001953125
            %v482 = vmul.f32 %v476, %v476
            %v483 = vmul.f32 %v477, %v477
            %v484 = vsub.f32 %v480, %v482
            %v485 = vsub.f32 %v481, %v483
            %v486 = vld [vmem:[%s4] sm:$0xff]
            %v487 = vld [vmem:[%s4 + $0x8] sm:$0xff]
            %v488 = vadd.f32 %v484, 1e-05
            %v489 = vadd.f32 %v485, 1e-05
            %v490 = vrsqrt.pop %v488
            %v491 = vrsqrt.pop %v489
            %v492 = vmul.f32 %v486, %v490
            %v493 = vmul.f32 %v487, %v491
            %v494 = vld [vmem:[%s5] sm:$0xff]
            %v495 = vld [vmem:[%s5 + $0x8] sm:$0xff]
            %v496 = vmul.f32 %v476, %v492
            %v497 = vmul.f32 %v477, %v493
            %v498 = vsub.f32 %v494, %v496
            %v499 = vsub.f32 %v495, %v497
            %500 = vst.msk [vmem:[#allocation5] sm:$0xff] %vm453, %v498
            %501 = vst.msk [vmem:[#allocation5 + $0x8] sm:$0xff] %vm453, %v499
            %v502 = vld [vmem:[%s3] sm:$0xf]
            %v503 = vld [vmem:[%s3 + $0x4] sm:$0xf]
            %v504 = vunpack.c.l.bf16 %v502
            %v505 = vunpack.c.l.bf16 %v503
            %507 = vset.pattern.permute.xlu0 0
            %508 = vperm.xlu0 %507, %v492
            %v509 = vpop.permute.xlu0 %508
            %512 = vset.pattern.permute.xlu0 0
            %513 = vperm.xlu0 %512, %v493
            %v514 = vpop.permute.xlu0 %513
            %v516 = vmul.f32 %v509, %v504
            %v517 = vmul.f32 %v514, %v505
            %v518 = vpack.c.bf16 %v517, %v516
            %519 = vst.msk [vmem:[#allocation4] sm:$0xff] %vm396, %v518
          $region60: #{tpu_custom_call.1} parent=51 // pred_fallthru
            _
        $region52: #{tpu_custom_call.1} parent=47 // pred_fallthru
          _
        %p520 = scmp.eq.s32.totalorder %s26, 1
        // Predicated region
        $region61: #{tpu_custom_call.1} parent=47 // pred_check
          %p521 = pneg %p520
        $region62: #{tpu_custom_call.1} parent=47 // pred_check_branch
          %523 = sbr.rel (%p521) target = $region64
        $region63: #{tpu_custom_call.1} parent=47 // pred_region
          %v524 = vld [vmem:[#allocation4] sm:$0xff]
          %v525 = vld [vmem:[#allocation5] sm:$0xff]
          %v526 = vld [vmem:[#allocation5 + $0x8] sm:$0xff]
          %528 = vset.pattern.permute.xlu0 0
          %529 = vperm.xlu0 %528, %v525
          %v530 = vpop.permute.xlu0 %529
          %533 = vset.pattern.permute.xlu0 0
          %534 = vperm.xlu0 %533, %v526
          %v535 = vpop.permute.xlu0 %534
          %vm537 = vcmask 64512
          %v539 = vsel %vm537, %v524, 0
          %vm541 = vcmask 1043456
          %v543 = vsel %vm541, %v373, 0
          %545 = vmatprep.subr.bf16.mxu0 0
          %546 = vmatpush1.bf16.msra.mxu0 %v543
          %547 = vmatprep.subr.bf16.mxu0 0
          %548 = vmatpush1.bf16.msra.mxu0 0
          %549 = vmatprep.subr.bf16.mxu0 0
          %550 = vmatpush1.bf16.msra.mxu0 0
          %551 = vmatprep.subr.bf16.mxu0 0
          %552 = vmatpush1.bf16.msra.mxu0 0
          %553 = vmatprep.subr.bf16.mxu0 0
          %554 = vmatpush1.bf16.msra.mxu0 0
          %555 = vmatprep.subr.bf16.mxu0 0
          %556 = vmatpush1.bf16.msra.mxu0 0
          %557 = vmatprep.subr.bf16.mxu0 0
          %558 = vmatpush1.bf16.msra.mxu0 0
          %559 = vmatprep.subr.bf16.mxu0 0
          %560 = vmatpush1.bf16.msra.mxu0 0
          %561 = vmatprep.subr.bf16.mxu0 0
          %562 = vmatpush1.bf16.msra.mxu0 0
          %563 = vmatprep.subr.bf16.mxu0 0
          %564 = vmatpush1.bf16.msra.mxu0 0
          %565 = vmatprep.subr.bf16.mxu0 0
          %566 = vmatpush1.bf16.msra.mxu0 0
          %567 = vmatprep.subr.bf16.mxu0 0
          %568 = vmatpush1.bf16.msra.mxu0 0
          %569 = vmatprep.subr.bf16.mxu0 0
          %570 = vmatpush1.bf16.msra.mxu0 0
          %571 = vmatprep.subr.bf16.mxu0 0
          %572 = vmatpush1.bf16.msra.mxu0 0
          %573 = vmatprep.subr.bf16.mxu0 0
          %574 = vmatpush1.bf16.msra.mxu0 0
          %575 = vmatprep.subr.bf16.mxu0 0
          %576 = vmatpush1.bf16.msra.mxu0 0
          %577 = vmatprep.mubr.bf16.mxu0 0
          %578 = vmatmul.mubr.bf16.gmra.mrb[0].mxu0 %v539
          %v579 = vpop.f32.mrb[0].mxu0
          %v580 = vadd.f32 %v530, %v579
          %v581 = vpop.f32.mrb[0].mxu0
          %v582 = vpop.f32.mrb[0].mxu0
          %v583 = vadd.f32 %v535, %v582
          %v584 = vpop.f32.mrb[0].mxu0
          %585 = vdwg.mxu0
          %v586 = vmul.f32 %v580, 0.2
          %v587 = vmul.f32 %v583, 0.2
          %v588 = vmax.f32 %v580, %v586
          %v589 = vmax.f32 %v583, %v587
          %v590 = vld [vmem:[%s6] sm:$0x1]
          %v591 = vpack.c.bf16 %v589, %v588
          %vm592 = vcmask 130048
          %v594 = vsel %vm592, %v590, 0
          %596 = vmatprep.subr.bf16.mxu0 0
          %597 = vmatpush1.bf16.msra.mxu0 %v591
          %598 = vmatprep.subr.bf16.mxu0 0
          %599 = vmatpush1.bf16.msra.mxu0 0
          %600 = vmatprep.subr.bf16.mxu0 0
          %601 = vmatpush1.bf16.msra.mxu0 0
          %602 = vmatprep.subr.bf16.mxu0 0
          %603 = vmatpush1.bf16.msra.mxu0 0
          %604 = vmatprep.subr.bf16.mxu0 0
          %605 = vmatpush1.bf16.msra.mxu0 0
          %606 = vmatprep.subr.bf16.mxu0 0
          %607 = vmatpush1.bf16.msra.mxu0 0
          %608 = vmatprep.subr.bf16.mxu0 0
          %609 = vmatpush1.bf16.msra.mxu0 0
          %610 = vmatprep.subr.bf16.mxu0 0
          %611 = vmatpush1.bf16.msra.mxu0 0
          %612 = vmatprep.subr.bf16.mxu0 0
          %613 = vmatpush1.bf16.msra.mxu0 0
          %614 = vmatprep.subr.bf16.mxu0 0
          %615 = vmatpush1.bf16.msra.mxu0 0
          %616 = vmatprep.subr.bf16.mxu0 0
          %617 = vmatpush1.bf16.msra.mxu0 0
          %618 = vmatprep.subr.bf16.mxu0 0
          %619 = vmatpush1.bf16.msra.mxu0 0
          %620 = vmatprep.subr.bf16.mxu0 0
          %621 = vmatpush1.bf16.msra.mxu0 0
          %622 = vmatprep.subr.bf16.mxu0 0
          %623 = vmatpush1.bf16.msra.mxu0 0
          %624 = vmatprep.subr.bf16.mxu0 0
          %625 = vmatpush1.bf16.msra.mxu0 0
          %626 = vmatprep.subr.bf16.mxu0 0
          %627 = vmatpush1.bf16.msra.mxu0 0
          %628 = vmatprep.mubr.bf16.mxu0 0
          %629 = vmatmul.mubr.bf16.gmra.mrb[0].mxu0 %v594
          %v630 = vpop.f32.mrb[0].mxu0
          %v631 = vadd.f32 0.0, %v630
          %v632 = vpop.f32.mrb[0].mxu0
          %v633 = vpop.f32.mrb[0].mxu0
          %v634 = vpop.f32.mrb[0].mxu0
          %635 = vdwg.mxu0
          %636 = vst [vmem:[%s303] sm:$0x1] %v631
        $region64: #{tpu_custom_call.1} parent=47 // pred_fallthru
          _
        %s637 = sand.u32 %s208, 1
        %s638 = scalar_lea.sflag [#allocation7], %s637
        %s639 = sand.u32 %s208, 1
        %s640 = scalar_lea.vmem [#allocation6], %s639
        // Predicated region
        $region65: #{tpu_custom_call.1} parent=47 // pred_check
          %p641 = pneg %p218
        $region66: #{tpu_custom_call.1} parent=47 // pred_check_branch
          %643 = sbr.rel (%p641) target = $region68
        $region67: #{tpu_custom_call.1} parent=47 // pred_region
          %s644 = smul.u32 %s27, %s26
          %s645 = smul.u32 %s28, %s26
          %s647 = ssub.s32 16, 16
          %648 = vsyncadd %s638, %s647
          %s649 = smul.addr %s644, 2
          %s650 = sadd.s32 %s645, %s649
          %s651 = smul.addr %s650, 16
          %s652 = scalar_lea.hbm %s7, %s651
          %s654 = sshll.u32 %s640, 4
          %s655 = int_to_ptr.vmem [resolvable:$true] %s654
          %657 = dma.vmem_to_hbm [thread:$0]  %s655, 16, %s652, %s638
        $region68: #{tpu_custom_call.1} parent=47 // pred_fallthru
          _
      $region48: #{tpu_custom_call.1} parent=5 // pred_fallthru
        _
      %p658 = scmp.le.s32.totalorder 2, %s16
      // Predicated region
      $region69: #{tpu_custom_call.1} parent=5 // pred_check
        %p659 = pneg %p658
      $region70: #{tpu_custom_call.1} parent=5 // pred_check_branch
        %661 = sbr.rel (%p659) target = $region72
      $region71: #{tpu_custom_call.1} parent=5 // pred_region
        %s662 = ssub.s32 %s16, 2
        // Predicated region
        $region73: #{tpu_custom_call.1} parent=71 // pred_check
          %p663 = pneg %p224
        $region74: #{tpu_custom_call.1} parent=71 // pred_check_branch
          %665 = sbr.rel (%p663) target = $region76
        $region75: #{tpu_custom_call.1} parent=71 // pred_region
          %s666 = sand.u32 %s209, 1
          %s667 = scalar_lea.sflag [#allocation7], %s666
          %s668 = sand.u32 %s209, 1
          %s669 = scalar_lea.vmem [#allocation6], %s668
          %670 = dma.done %s667, 16
        $region76: #{tpu_custom_call.1} parent=71 // pred_fallthru
          _
      $region72: #{tpu_custom_call.1} parent=5 // pred_fallthru
        _
    $region6: #{tpu_custom_call.1} parent=1 // loop_footer
      %s20 = sadd.s32 1, %s16
    $region7: #{tpu_custom_call.1} parent=1 // loop_footer_branch
      %15 = sbr.rel target = $region3
    $region8: #{tpu_custom_call.1} parent=1 // loop_exit
      _
    %671 = vsyncpa [#allocation7], 1
    %s672 = scalar_lea.sflag [#allocation7], 1
    %673 = vsyncpa %s672, 1

</llo_original>
